<compile_context>
chip_gen: v7x
topology: tpu7x:2x2x1
jax: 0.10.0
libtpu: 0.0.40
codegen_flags: <defaults>
</compile_context>

<pallas_src>
import functools
import math

import jax
import jax.numpy as jnp
from jax.experimental import pallas as pl
from jax.experimental.pallas import tpu as pltpu


# ---------------------------------------------------------------------------
# Kernel 1: fused QKV projection over a row tile of the flattened activations.
# ---------------------------------------------------------------------------
def _qkv_proj_kernel(x_ref, wqkv_ref, bqkv_ref, q_ref, k_ref, v_ref, *, H):
    # [TM, H] @ [H, 3H] -> [TM, 3H]; bf16 MXU operands, f32 accumulation.
    x = x_ref[...].astype(jnp.bfloat16)
    qkv = jnp.dot(x, wqkv_ref[...], preferred_element_type=jnp.float32)
    qkv = qkv + bqkv_ref[...]
    # Store intermediates in bf16: kernel 2 consumes them as bf16 MXU operands
    # anyway, and this halves the HBM round-trip bytes.
    q_ref[...] = qkv[:, :H].astype(q_ref.dtype)
    k_ref[...] = qkv[:, H:2 * H].astype(k_ref.dtype)
    v_ref[...] = qkv[:, 2 * H:].astype(v_ref.dtype)


# ---------------------------------------------------------------------------
# Kernel 2: batched multi-head attention for one (batch, query-tile) block.
# ---------------------------------------------------------------------------
def _attention_kernel(q_ref, k_ref, v_ref, mask_ref, ctx_ref, *rest, NH, DH,
                      with_probs):
    if with_probs:
        probs_ref, kh_sc, vh_sc = rest
    else:
        probs_ref = None
        kh_sc, vh_sc = rest

    TQ = q_ref.shape[1]
    S = k_ref.shape[1]
    scale = 1.0 / math.sqrt(DH)

    # Hoist the per-batch head-split relayout of K/V out of the query-tile
    # loop: the (1, S, H) K/V blocks only change with the batch index, so the
    # bf16 [NH, S, DH] scratch is filled once per batch (qi == 0) and reused
    # by every query tile (the qi grid axis is "arbitrary").
    @pl.when(pl.program_id(1) == 0)
    def _():
        kh_sc[...] = jnp.transpose(k_ref[0].reshape(S, NH, DH), (1, 0, 2))
        vh_sc[...] = jnp.transpose(v_ref[0].reshape(S, NH, DH), (1, 0, 2))

    # [1, TQ, H] -> [NH, TQ, DH] (already bf16, the MXU operand dtype).
    qh = jnp.transpose(q_ref[0].reshape(TQ, NH, DH), (1, 0, 2))

    # Batched scores for all heads at once: [NH, TQ, S], f32 accumulation.
    scores = jnp.einsum("hqd,hkd->hqk", qh, kh_sc[...],
                        preferred_element_type=jnp.float32) * scale
    scores = scores + mask_ref[...]          # (1, 1, S) broadcast, added once

    # softmax(dim=-1) in f32.  Exact division so the *returned* probs match
    # torch.softmax; the temporaries are a single scores -> e -> p chain so
    # the compiler can reuse the [NH, TQ, S] buffer.
    m = jnp.max(scores, axis=-1, keepdims=True)
    e = jnp.exp(scores - m)
    p = e / jnp.sum(e, axis=-1, keepdims=True)
    if with_probs:
        probs_ref[0] = p.astype(probs_ref.dtype)
    # TODO(synk): attention_probs dropout is a training-time stochastic mask;
    # eval semantics (identity) are implemented here.

    ctx = jnp.einsum("hqk,hkd->hqd", p.astype(jnp.bfloat16), vh_sc[...],
                     preferred_element_type=jnp.float32)
    # Merge heads back to a lane-dense [TQ, H] slab before the store.
    ctx_ref[0] = jnp.transpose(ctx, (1, 0, 2)).reshape(TQ, NH * DH)


# ---------------------------------------------------------------------------
# Helpers
# ---------------------------------------------------------------------------
def _row_tile(n, target):
    """Largest tile <= target that divides n and is a multiple of 8.

    Falls back to one full block when no such divisor exists (the (8, 128)
    rule only allows non-multiple-of-8 second-minor tiles that span the full
    dimension).
    """
    if n <= target:
        return n
    for t in range(target, 7, -1):
        if n % t == 0 and t % 8 == 0:
            return t
    return n


def _vmem_limit_bytes(default=48 * 1024 * 1024):
    """~75% of physical VMEM: ~48 MiB on v7x (64 MiB), ~96 MiB on v5e/v6e."""
    try:
        cap = int(pltpu.get_tpu_info().vmem_capacity_bytes)
        return (cap * 3) // 4
    except Exception:
        return default


def _qkv_projection(x2d, wqkv, bqkv, H, TM, vmem_limit):
    M = x2d.shape[0]
    grid = (M // TM,)
    cost = pl.CostEstimate(
        flops=2 * M * H * 3 * H,
        transcendentals=0,
        bytes_accessed=int(M * H * 4 + H * 3 * H * 2 + 3 * H * 4
                           + 3 * M * H * 2),
    )

    def call(single_buffer_weights):
        if single_buffer_weights:
            # Constant index_map -> one resident VMEM copy is enough; skipping
            # the second buffer frees headroom for a larger TM (v7x especially).
            w_spec = pl.BlockSpec((H, 3 * H), lambda i: (0, 0),
                                  pipeline_mode=pl.Buffered(1))
            b_spec = pl.BlockSpec((1, 3 * H), lambda i: (0, 0),
                                  pipeline_mode=pl.Buffered(1))
        else:
            w_spec = pl.BlockSpec((H, 3 * H), lambda i: (0, 0))
            b_spec = pl.BlockSpec((1, 3 * H), lambda i: (0, 0))
        return pl.pallas_call(
            functools.partial(_qkv_proj_kernel, H=H),
            grid=grid,
            in_specs=[pl.BlockSpec((TM, H), lambda i: (i, 0)), w_spec, b_spec],
            out_specs=(pl.BlockSpec((TM, H), lambda i: (i, 0)),) * 3,
            out_shape=(jax.ShapeDtypeStruct((M, H), jnp.bfloat16),) * 3,
            compiler_params=pltpu.CompilerParams(
                dimension_semantics=("parallel",),
                vmem_limit_bytes=vmem_limit),
            cost_estimate=cost,
        )(x2d, wqkv, bqkv)

    try:
        return call(hasattr(pl, "Buffered"))
    except Exception:
        return call(False)


# ---------------------------------------------------------------------------
# Wrapper
# ---------------------------------------------------------------------------
def bert_self_attention(hidden_states, attention_mask, params, num_heads,
                        output_attentions=True, probs_dtype=jnp.float32):
    """Pallas forward of BertSelfAttention.

    Returns (context_layer, attention_probs) when output_attentions=True
    (matching the PyTorch module), otherwise just the context layer.
    """
    B, S, H = hidden_states.shape
    assert H % num_heads == 0
    NH = num_heads
    DH = H // NH

    vmem_limit = _vmem_limit_bytes()

    # ---------------- Kernel 1: fused QKV projection ----------------
    wqkv = jnp.concatenate(
        [params["wq"], params["wk"], params["wv"]], axis=1).astype(jnp.bfloat16)
    bqkv = jnp.concatenate(
        [params["bq"], params["bk"], params["bv"]], axis=1).astype(jnp.float32)

    x2d = hidden_states.reshape(B * S, H)
    TM = _row_tile(B * S, 512)
    q2d, k2d, v2d = _qkv_projection(x2d, wqkv, bqkv, H, TM, vmem_limit)

    q = q2d.reshape(B, S, H)
    k = k2d.reshape(B, S, H)
    v = v2d.reshape(B, S, H)
    mask3 = attention_mask.reshape(B, 1, S).astype(jnp.float32)

    # ---------------- Kernel 2: batched multi-head attention ----------------
    # TQ=256 when the VMEM budget allows (v5e/v6e, 128 MiB), 128 on v7x (~48 MiB).
    tq_target = 256 if vmem_limit >= 80 * 1024 * 1024 else 128
    TQ = _row_tile(S, tq_target)
    grid_attn = (B, S // TQ)

    probs_bytes = (B * NH * S * S * jnp.dtype(probs_dtype).itemsize
                   if output_attentions else 0)
    attn_cost = pl.CostEstimate(
        flops=4 * B * S * S * H,
        transcendentals=B * NH * S * S,
        bytes_accessed=int(3 * B * S * H * 2 + B * S * 4 + B * S * H * 4
                           + probs_bytes),
    )

    out_specs = [pl.BlockSpec((1, TQ, H), lambda b, qi: (b, qi, 0))]
    out_shape = [jax.ShapeDtypeStruct((B, S, H), jnp.float32)]
    if output_attentions:
        out_specs.append(
            pl.BlockSpec((1, NH, TQ, S), lambda b, qi: (b, 0, qi, 0)))
        out_shape.append(jax.ShapeDtypeStruct((B, NH, S, S), probs_dtype))

    results = pl.pallas_call(
        functools.partial(_attention_kernel, NH=NH, DH=DH,
                          with_probs=output_attentions),
        grid=grid_attn,
        in_specs=[
            pl.BlockSpec((1, TQ, H), lambda b, qi: (b, qi, 0)),   # query tile
            pl.BlockSpec((1, S, H), lambda b, qi: (b, 0, 0)),     # full keys
            pl.BlockSpec((1, S, H), lambda b, qi: (b, 0, 0)),     # full values
            pl.BlockSpec((1, 1, S), lambda b, qi: (b, 0, 0)),     # additive mask
        ],
        out_specs=tuple(out_specs),
        out_shape=tuple(out_shape),
        scratch_shapes=[
            pltpu.VMEM((NH, S, DH), jnp.bfloat16),   # per-batch head-split K
            pltpu.VMEM((NH, S, DH), jnp.bfloat16),   # per-batch head-split V
        ],
        compiler_params=pltpu.CompilerParams(
            # qi is "arbitrary" so the per-batch K/V scratch persists across
            # query tiles; megacore shards on the batch ("parallel") axis.
            dimension_semantics=("parallel", "arbitrary"),
            vmem_limit_bytes=vmem_limit),
        cost_estimate=attn_cost,
    )(q, k, v, mask3)

    if output_attentions:
        ctx, probs = results
        return ctx, probs
    (ctx,) = results
    return ctx


# ---------------------------------------------------------------------------
# Pure-JAX f32 reference (mirrors the PyTorch forward) for a sanity check.
# ---------------------------------------------------------------------------
def reference_self_attention(hidden, attn_mask, params, num_heads):
    B, S, H = hidden.shape
    dh = H // num_heads
    x = hidden.reshape(B * S, H)

    def proj(w, b):
        y = x @ w + b
        return y.reshape(B, S, num_heads, dh).transpose(0, 2, 1, 3)

    q = proj(params["wq"], params["bq"])
    k = proj(params["wk"], params["bk"])
    v = proj(params["wv"], params["bv"])
    scores = jnp.einsum("bhqd,bhkd->bhqk", q, k) / math.sqrt(dh)
    scores = scores + attn_mask[:, None, None, :]
    probs = jax.nn.softmax(scores, axis=-1)
    ctx = jnp.einsum("bhqk,bhkd->bhqd", probs, v)
    ctx = ctx.transpose(0, 2, 1, 3).reshape(B, S, H)
    return ctx, probs


if __name__ == "__main__":
    # Small BERT-ish config: hidden=32, heads=4 (head_dim=8), batch=2, seq=8.
    B, S, H, NH = 2, 8, 32, 4

    key = jax.random.PRNGKey(0)
    k_h, k_wq, k_wk, k_wv, k_bq, k_bk, k_bv = jax.random.split(key, 7)

    hidden = jax.random.normal(k_h, (B, S, H), jnp.float32)

    init_w = lambda kk: 0.02 * jax.random.normal(kk, (H, H), jnp.float32)
    init_b = lambda kk: 0.01 * jax.random.normal(kk, (1, H), jnp.float32)
    params = dict(
        wq=init_w(k_wq), bq=init_b(k_bq),
        wk=init_w(k_wk), bk=init_b(k_bk),
        wv=init_w(k_wv), bv=init_b(k_bv),
    )

    # BERT-style extended additive attention mask: mask the last 2 key
    # positions of batch element 1 (0 keep / -10000 masked).
    input_mask = jnp.ones((B, S), jnp.float32).at[1, S - 2:].set(0.0)
    attn_mask = (1.0 - input_mask) * -10000.0

    # Default path: matches the module (returns context + attention_probs).
    ctx, probs = bert_self_attention(hidden, attn_mask, params, NH)
    ctx, probs = jax.block_until_ready((ctx, probs))

    # Fast path: probs materialization skipped (store-bound output removed).
    ctx_only = bert_self_attention(hidden, attn_mask, params, NH,
                                   output_attentions=False)
    ctx_only = jax.block_until_ready(ctx_only)

    ref_ctx, ref_probs = reference_self_attention(hidden, attn_mask, params, NH)

    assert ctx.shape == (B, S, H) and probs.shape == (B, NH, S, S)
    assert bool(jnp.isfinite(ctx).all()) and bool(jnp.isfinite(probs).all())
    # bf16 MXU operands / bf16 q-k-v intermediates vs the f32 reference.
    assert bool(jnp.allclose(ctx, ref_ctx, atol=2e-2, rtol=2e-2)), \
        float(jnp.max(jnp.abs(ctx - ref_ctx)))
    assert bool(jnp.allclose(probs, ref_probs, atol=2e-2, rtol=2e-2)), \
        float(jnp.max(jnp.abs(probs - ref_probs)))
    assert bool(jnp.allclose(ctx_only, ctx, atol=1e-5, rtol=1e-5)), \
        float(jnp.max(jnp.abs(ctx_only - ctx)))
    print("KERNEL_OK")
</pallas_src>

<mosaic_0001>
module attributes {stable_mosaic.version = 11 : i64} {
  func.func @_qkv_proj_kernel(%arg0: i32, %arg1: memref<16x32xf32, #tpu.memory_space<vmem>>, %arg2: memref<32x96xbf16, #tpu.memory_space<vmem>>, %arg3: memref<1x96xf32, #tpu.memory_space<vmem>>, %arg4: memref<16x32xbf16, #tpu.memory_space<vmem>>, %arg5: memref<16x32xbf16, #tpu.memory_space<vmem>>, %arg6: memref<16x32xbf16, #tpu.memory_space<vmem>>) attributes {dimension_semantics = [#tpu.dimension_semantics<parallel>], iteration_bounds = array<i64: 1>, scalar_prefetch = 0 : i64, scratch_operands = 0 : i64, tpu.core_type = #tpu.core_type<tc>, window_params = [{transform_indices = @transform_0, window_bounds = array<i64: 16, 32>}, {pipeline_mode = #tpu.pipeline_mode<synchronous>, transform_indices = @transform_1, window_bounds = array<i64: 32, 96>}, {pipeline_mode = #tpu.pipeline_mode<synchronous>, transform_indices = @transform_2, window_bounds = array<i64: 1, 96>}, {transform_indices = @transform_3, window_bounds = array<i64: 16, 32>}, {transform_indices = @transform_4, window_bounds = array<i64: 16, 32>}, {transform_indices = @transform_5, window_bounds = array<i64: 16, 32>}]} {
    %c0 = arith.constant 0 : index
    %c0_0 = arith.constant 0 : index
    %0 = vector.load %arg1[%c0, %c0_0] : memref<16x32xf32, #tpu.memory_space<vmem>>, vector<16x32xf32>
    %1 = arith.truncf %0 : vector<16x32xf32> to vector<16x32xbf16>
    %c0_1 = arith.constant 0 : index
    %c0_2 = arith.constant 0 : index
    %2 = vector.load %arg2[%c0_1, %c0_2] : memref<32x96xbf16, #tpu.memory_space<vmem>>, vector<32x96xbf16>
    %cst = arith.constant dense<0.000000e+00> : vector<16x96xf32>
    %3 = tpu.matmul %1, %2, %cst {dimension_numbers = #tpu.dot_dimension_numbers<[1], [0], [0], [1], [0, 0, 1, 1], [], []>} : vector<16x32xbf16>, vector<32x96xbf16>, vector<16x96xf32> -> vector<16x96xf32>
    %c0_3 = arith.constant 0 : index
    %c0_4 = arith.constant 0 : index
    %4 = vector.load %arg3[%c0_3, %c0_4] : memref<1x96xf32, #tpu.memory_space<vmem>>, vector<1x96xf32>
    %5 = vector.broadcast %4 : vector<1x96xf32> to vector<16x96xf32>
    %6 = arith.addf %3, %5 : vector<16x96xf32>
    %7 = vector.extract_strided_slice %6 {offsets = [0, 0], sizes = [16, 32], strides = [1, 1]} : vector<16x96xf32> to vector<16x32xf32>
    %8 = arith.truncf %7 : vector<16x32xf32> to vector<16x32xbf16>
    %c0_5 = arith.constant 0 : index
    %c0_6 = arith.constant 0 : index
    %9 = vector.load %arg4[%c0_5, %c0_6] : memref<16x32xbf16, #tpu.memory_space<vmem>>, vector<16x32xbf16>
    tpu.vector_store %arg4[%c0_5, %c0_6], %8 {strides = array<i32>} : memref<16x32xbf16, #tpu.memory_space<vmem>>, vector<16x32xbf16>,
    %10 = vector.extract_strided_slice %6 {offsets = [0, 32], sizes = [16, 32], strides = [1, 1]} : vector<16x96xf32> to vector<16x32xf32>
    %11 = arith.truncf %10 : vector<16x32xf32> to vector<16x32xbf16>
    %c0_7 = arith.constant 0 : index
    %c0_8 = arith.constant 0 : index
    %12 = vector.load %arg5[%c0_7, %c0_8] : memref<16x32xbf16, #tpu.memory_space<vmem>>, vector<16x32xbf16>
    tpu.vector_store %arg5[%c0_7, %c0_8], %11 {strides = array<i32>} : memref<16x32xbf16, #tpu.memory_space<vmem>>, vector<16x32xbf16>,
    %13 = vector.extract_strided_slice %6 {offsets = [0, 64], sizes = [16, 32], strides = [1, 1]} : vector<16x96xf32> to vector<16x32xf32>
    %14 = arith.truncf %13 : vector<16x32xf32> to vector<16x32xbf16>
    %c0_9 = arith.constant 0 : index
    %c0_10 = arith.constant 0 : index
    %15 = vector.load %arg6[%c0_9, %c0_10] : memref<16x32xbf16, #tpu.memory_space<vmem>>, vector<16x32xbf16>
    tpu.vector_store %arg6[%c0_9, %c0_10], %14 {strides = array<i32>} : memref<16x32xbf16, #tpu.memory_space<vmem>>, vector<16x32xbf16>,
    return
  }
  func.func @transform_0(%arg0: i32) -> (i32, i32) {
    %c0_i32 = arith.constant 0 : i32
    %c0_i32_0 = arith.constant 0 : i32
    return %arg0, %c0_i32 : i32, i32
  }
  func.func @transform_1(%arg0: i32) -> (i32, i32) {
    %c0_i32 = arith.constant 0 : i32
    %c0_i32_0 = arith.constant 0 : i32
    %c0_i32_1 = arith.constant 0 : i32
    return %c0_i32, %c0_i32_0 : i32, i32
  }
  func.func @transform_2(%arg0: i32) -> (i32, i32) {
    %c0_i32 = arith.constant 0 : i32
    %c0_i32_0 = arith.constant 0 : i32
    %c0_i32_1 = arith.constant 0 : i32
    return %c0_i32, %c0_i32_0 : i32, i32
  }
  func.func @transform_3(%arg0: i32) -> (i32, i32) {
    %c0_i32 = arith.constant 0 : i32
    %c0_i32_0 = arith.constant 0 : i32
    return %arg0, %c0_i32 : i32, i32
  }
  func.func @transform_4(%arg0: i32) -> (i32, i32) {
    %c0_i32 = arith.constant 0 : i32
    %c0_i32_0 = arith.constant 0 : i32
    return %arg0, %c0_i32 : i32, i32
  }
  func.func @transform_5(%arg0: i32) -> (i32, i32) {
    %c0_i32 = arith.constant 0 : i32
    %c0_i32_0 = arith.constant 0 : i32
    return %arg0, %c0_i32 : i32, i32
  }
}

module attributes {stable_mosaic.version = 11 : i64} {
  func.func @_qkv_proj_kernel(%arg0: i32, %arg1: memref<16x32xf32, #tpu.memory_space<vmem>>, %arg2: memref<32x96xbf16, #tpu.memory_space<vmem>>, %arg3: memref<1x96xf32, #tpu.memory_space<vmem>>, %arg4: memref<16x32xbf16, #tpu.memory_space<vmem>>, %arg5: memref<16x32xbf16, #tpu.memory_space<vmem>>, %arg6: memref<16x32xbf16, #tpu.memory_space<vmem>>) attributes {dimension_semantics = [#tpu.dimension_semantics<parallel>], iteration_bounds = array<i64: 1>, scalar_prefetch = 0 : i64, scratch_operands = 0 : i64, tpu.core_type = #tpu.core_type<tc>, window_params = [{transform_indices = @transform_0, window_bounds = array<i64: 16, 32>}, {pipeline_mode = #tpu.pipeline_mode<synchronous>, transform_indices = @transform_1, window_bounds = array<i64: 32, 96>}, {pipeline_mode = #tpu.pipeline_mode<synchronous>, transform_indices = @transform_2, window_bounds = array<i64: 1, 96>}, {transform_indices = @transform_3, window_bounds = array<i64: 16, 32>}, {transform_indices = @transform_4, window_bounds = array<i64: 16, 32>}, {transform_indices = @transform_5, window_bounds = array<i64: 16, 32>}]} {
    %c0 = arith.constant 0 : index
    %c0_0 = arith.constant 0 : index
    %0 = vector.load %arg1[%c0, %c0_0] : memref<16x32xf32, #tpu.memory_space<vmem>>, vector<16x32xf32>
    %1 = arith.truncf %0 : vector<16x32xf32> to vector<16x32xbf16>
    %c0_1 = arith.constant 0 : index
    %c0_2 = arith.constant 0 : index
    %2 = vector.load %arg2[%c0_1, %c0_2] : memref<32x96xbf16, #tpu.memory_space<vmem>>, vector<32x96xbf16>
    %cst = arith.constant dense<0.000000e+00> : vector<16x96xf32>
    %3 = tpu.matmul %1, %2, %cst {dimension_numbers = #tpu.dot_dimension_numbers<[1], [0], [0], [1], [0, 0, 1, 1], [], []>} : vector<16x32xbf16>, vector<32x96xbf16>, vector<16x96xf32> -> vector<16x96xf32>
    %c0_3 = arith.constant 0 : index
    %c0_4 = arith.constant 0 : index
    %4 = vector.load %arg3[%c0_3, %c0_4] : memref<1x96xf32, #tpu.memory_space<vmem>>, vector<1x96xf32>
    %5 = vector.broadcast %4 : vector<1x96xf32> to vector<16x96xf32>
    %6 = arith.addf %3, %5 : vector<16x96xf32>
    %7 = vector.extract_strided_slice %6 {offsets = [0, 0], sizes = [16, 32], strides = [1, 1]} : vector<16x96xf32> to vector<16x32xf32>
    %8 = arith.truncf %7 : vector<16x32xf32> to vector<16x32xbf16>
    %c0_5 = arith.constant 0 : index
    %c0_6 = arith.constant 0 : index
    %9 = vector.load %arg4[%c0_5, %c0_6] : memref<16x32xbf16, #tpu.memory_space<vmem>>, vector<16x32xbf16>
    tpu.vector_store %arg4[%c0_5, %c0_6], %8 {strides = array<i32>} : memref<16x32xbf16, #tpu.memory_space<vmem>>, vector<16x32xbf16>,
    %10 = vector.extract_strided_slice %6 {offsets = [0, 32], sizes = [16, 32], strides = [1, 1]} : vector<16x96xf32> to vector<16x32xf32>
    %11 = arith.truncf %10 : vector<16x32xf32> to vector<16x32xbf16>
    %c0_7 = arith.constant 0 : index
    %c0_8 = arith.constant 0 : index
    %12 = vector.load %arg5[%c0_7, %c0_8] : memref<16x32xbf16, #tpu.memory_space<vmem>>, vector<16x32xbf16>
    tpu.vector_store %arg5[%c0_7, %c0_8], %11 {strides = array<i32>} : memref<16x32xbf16, #tpu.memory_space<vmem>>, vector<16x32xbf16>,
    %13 = vector.extract_strided_slice %6 {offsets = [0, 64], sizes = [16, 32], strides = [1, 1]} : vector<16x96xf32> to vector<16x32xf32>
    %14 = arith.truncf %13 : vector<16x32xf32> to vector<16x32xbf16>
    %c0_9 = arith.constant 0 : index
    %c0_10 = arith.constant 0 : index
    %15 = vector.load %arg6[%c0_9, %c0_10] : memref<16x32xbf16, #tpu.memory_space<vmem>>, vector<16x32xbf16>
    tpu.vector_store %arg6[%c0_9, %c0_10], %14 {strides = array<i32>} : memref<16x32xbf16, #tpu.memory_space<vmem>>, vector<16x32xbf16>,
    return
  }
  func.func @transform_0(%arg0: i32) -> (i32, i32) {
    %c0_i32 = arith.constant 0 : i32
    %c0_i32_0 = arith.constant 0 : i32
    return %arg0, %c0_i32 : i32, i32
  }
  func.func @transform_1(%arg0: i32) -> (i32, i32) {
    %c0_i32 = arith.constant 0 : i32
    %c0_i32_0 = arith.constant 0 : i32
    %c0_i32_1 = arith.constant 0 : i32
    return %c0_i32, %c0_i32_0 : i32, i32
  }
  func.func @transform_2(%arg0: i32) -> (i32, i32) {
    %c0_i32 = arith.constant 0 : i32
    %c0_i32_0 = arith.constant 0 : i32
    %c0_i32_1 = arith.constant 0 : i32
    return %c0_i32, %c0_i32_0 : i32, i32
  }
  func.func @transform_3(%arg0: i32) -> (i32, i32) {
    %c0_i32 = arith.constant 0 : i32
    %c0_i32_0 = arith.constant 0 : i32
    return %arg0, %c0_i32 : i32, i32
  }
  func.func @transform_4(%arg0: i32) -> (i32, i32) {
    %c0_i32 = arith.constant 0 : i32
    %c0_i32_0 = arith.constant 0 : i32
    return %arg0, %c0_i32 : i32, i32
  }
  func.func @transform_5(%arg0: i32) -> (i32, i32) {
    %c0_i32 = arith.constant 0 : i32
    %c0_i32_0 = arith.constant 0 : i32
    return %arg0, %c0_i32 : i32, i32
  }
}

</mosaic_0001>

<llo_original>
// kernel: tpu_custom_call.1
$region0: #{tpu_custom_call.1}
  #allocation0 [shape = 'u32[]', space=smem, size = 0x4, offset = 0x4, fixed_abs, tag = 'smem constant byte address 0x4 - core index']
  #allocation1 [shape = 'u32[144,128]{1,0:T(1,128)}', space=vmem, size = 0x12000, scoped, tag = 'internal scratch']
  %s0 = inlined_call_operand.hbm [shape: f32[16,32], index: 0, kind: input, shape index: {}]
  %s1 = inlined_call_operand.hbm [shape: bf16[32,96], index: 1, kind: input, shape index: {}]
  %s2 = inlined_call_operand.vmem [shape: f32[1,96], index: 2, kind: input, shape index: {}]
  %s3 = inlined_call_operand.hbm [shape: bf16[16,32], index: 3, kind: output, shape index: {0}]
  %s4 = inlined_call_operand.hbm [shape: bf16[16,32], index: 4, kind: output, shape index: {1}]
  %s5 = inlined_call_operand.hbm [shape: bf16[16,32], index: 5, kind: output, shape index: {2}]
  %6 = xla_tuple %s3, %s4, %s5
  %s7 = sld [smem:[#allocation0]]
  $region46: #{tpu_custom_call.1} parent=0
    _
  %s9 = ssub.s32 1, %s7
  %s10 = scalar_select 0, %s9, %s7
  $region1: #{tpu_custom_call.1} parent=0
    #allocation2 [shape = 'u8[8192]{0}', space=vmem, size = 0x2000, scoped, tag = 'input window, operand 0, single buffered']
    #allocation3 [shape = 's32[1]{0}', space=sflag, size = 0x4, scoped, tag = 'scoped memory for tpu_custom_call.1']
    #allocation4 [shape = 's32[1]{0}', space=sflag, size = 0x4, scoped, tag = 'scoped memory for tpu_custom_call.1']
    #allocation5 [shape = 'u8[8192]{0}', space=vmem, size = 0x2000, scoped, tag = 'input window, operand 1, single buffered']
    #allocation6 [shape = 's32[1]{0}', space=sflag, size = 0x4, scoped, tag = 'scoped memory for tpu_custom_call.1']
    #allocation7 [shape = 'u8[4096]{0}', space=vmem, size = 0x1000, scoped, tag = 'output window, operand 0, single buffered']
    #allocation8 [shape = 'u8[4096]{0}', space=vmem, size = 0x1000, scoped, tag = 'output window, operand 1, single buffered']
    #allocation9 [shape = 's32[1]{0}', space=sflag, size = 0x4, scoped, tag = 'scoped memory for tpu_custom_call.1']
    #allocation10 [shape = 'u8[4096]{0}', space=vmem, size = 0x1000, scoped, tag = 'output window, operand 2, single buffered']
    %11 = vsyncpa [#allocation3], 0
    %12 = vsyncpa [#allocation6], 0
    %13 = vsyncpa [#allocation4], 0
    %14 = vsyncpa [#allocation9], 0
    // Predicated region
    $region2: #{tpu_custom_call.1} parent=1 // pred_check
      _
    $region3: #{tpu_custom_call.1} parent=1 // pred_check_branch
      %16 = sbr.rel (0) target = $region5
    $region4: #{tpu_custom_call.1} parent=1 // pred_region
      %s18 = ssub.s32 256, 256
      %19 = vsyncadd [#allocation3], %s18
      %s20 = sshll.u32 [#allocation2], 4
      %s21 = int_to_ptr.vmem [resolvable:$true] %s20
      %26 = dma.hbm_to_vmem [thread:$0]  %s0, 256, %s21, [#allocation3], 128, 128, 8
    $region5: #{tpu_custom_call.1} parent=1 // pred_fallthru
      _
    // Predicated region
    $region6: #{tpu_custom_call.1} parent=1 // pred_check
      _
    $region7: #{tpu_custom_call.1} parent=1 // pred_check_branch
      %28 = sbr.rel (0) target = $region9
    $region8: #{tpu_custom_call.1} parent=1 // pred_region
      %s30 = ssub.s32 256, 256
      %31 = vsyncadd [#allocation6], %s30
      %s32 = sshll.u32 [#allocation5], 4
      %s33 = int_to_ptr.vmem [resolvable:$true] %s32
      %38 = dma.hbm_to_vmem [thread:$0]  %s1, 256, %s33, [#allocation6], 64, 64, 4
    $region9: #{tpu_custom_call.1} parent=1 // pred_fallthru
      _
    // Predicated region
    $region10: #{tpu_custom_call.1} parent=1 // pred_check
      _
    $region11: #{tpu_custom_call.1} parent=1 // pred_check_branch
      %40 = sbr.rel (0) target = $region13
    $region12: #{tpu_custom_call.1} parent=1 // pred_region
      _
    $region13: #{tpu_custom_call.1} parent=1 // pred_fallthru
      _
    // Predicated region
    $region14: #{tpu_custom_call.1} parent=1 // pred_check
      _
    $region15: #{tpu_custom_call.1} parent=1 // pred_check_branch
      %42 = sbr.rel (0) target = $region17
    $region16: #{tpu_custom_call.1} parent=1 // pred_region
      %43 = dma.done [#allocation3], 256
    $region17: #{tpu_custom_call.1} parent=1 // pred_fallthru
      _
    // Predicated region
    $region18: #{tpu_custom_call.1} parent=1 // pred_check
      _
    $region19: #{tpu_custom_call.1} parent=1 // pred_check_branch
      %45 = sbr.rel (0) target = $region21
    $region20: #{tpu_custom_call.1} parent=1 // pred_region
      %46 = dma.done [#allocation6], 256
    $region21: #{tpu_custom_call.1} parent=1 // pred_fallthru
      _
    %v48 = vld [vmem:[#allocation2] sm:$0xff]
    %v49 = vld [vmem:[#allocation2 + $0x8] sm:$0xff]
    %v50 = vpack.c.bf16 %v49, %v48
    %v51 = vld [vmem:[#allocation5] sm:$0xf]
    %v52 = vld [vmem:[#allocation5 + $0x4] sm:$0xf]
    %v53 = vld [vmem:[#allocation5 + $0x8] sm:$0xf]
    %v54 = vld [vmem:[#allocation5 + $0xc] sm:$0xf]
    %v55 = vld [vmem:[%s2] sm:$0x1]
    %v57 = vlaneseq
    %v58 = vshrl.u32 %v57, 7
    %v59 = vsub.s32 0, %v58
    %v60 = vrot.slane %v55, %v59
    %v66 = vunpack.c.l.b16 %v51
    %v67 = vunpack.c.l.b16 %v52
    %v68 = vunpack.c.l.b16 %v53
    %v69 = vunpack.c.l.b16 %v54
    %v70 = vpack.c.b16 %v67, %v66
    %v71 = vpack.c.b16 %v69, %v68
    %vm74 = vcmask 261120
    %v76 = vsel %vm74, %v50, 0
    %78 = vmatprep.subr.bf16.mxu0 0
    %79 = vmatpush1.bf16.msra.mxu0 %v70
    %80 = vmatprep.subr.bf16.mxu0 0
    %81 = vmatpush1.bf16.msra.mxu0 %v71
    %82 = vmatprep.subr.bf16.mxu0 0
    %83 = vmatpush1.bf16.msra.mxu0 0
    %84 = vmatprep.subr.bf16.mxu0 0
    %85 = vmatpush1.bf16.msra.mxu0 0
    %86 = vmatprep.subr.bf16.mxu0 0
    %87 = vmatpush1.bf16.msra.mxu0 0
    %88 = vmatprep.subr.bf16.mxu0 0
    %89 = vmatpush1.bf16.msra.mxu0 0
    %90 = vmatprep.subr.bf16.mxu0 0
    %91 = vmatpush1.bf16.msra.mxu0 0
    %92 = vmatprep.subr.bf16.mxu0 0
    %93 = vmatpush1.bf16.msra.mxu0 0
    %94 = vmatprep.subr.bf16.mxu0 0
    %95 = vmatpush1.bf16.msra.mxu0 0
    %96 = vmatprep.subr.bf16.mxu0 0
    %97 = vmatpush1.bf16.msra.mxu0 0
    %98 = vmatprep.subr.bf16.mxu0 0
    %99 = vmatpush1.bf16.msra.mxu0 0
    %100 = vmatprep.subr.bf16.mxu0 0
    %101 = vmatpush1.bf16.msra.mxu0 0
    %102 = vmatprep.subr.bf16.mxu0 0
    %103 = vmatpush1.bf16.msra.mxu0 0
    %104 = vmatprep.subr.bf16.mxu0 0
    %105 = vmatpush1.bf16.msra.mxu0 0
    %106 = vmatprep.subr.bf16.mxu0 0
    %107 = vmatpush1.bf16.msra.mxu0 0
    %108 = vmatprep.subr.bf16.mxu0 0
    %109 = vmatpush1.bf16.msra.mxu0 0
    %110 = vmatprep.mubr.bf16.mxu0 0
    %111 = vmatmul.mubr.bf16.gmra.mrb[0].mxu0 %v76
    %v112 = vpop.f32.mrb[0].mxu0
    %v113 = vadd.f32 %v60, %v112
    %v114 = vpop.f32.mrb[0].mxu0
    %v115 = vpop.f32.mrb[0].mxu0
    %v116 = vadd.f32 %v60, %v115
    %v117 = vpop.f32.mrb[0].mxu0
    %118 = vdwg.mxu0
    %v119 = vpack.c.bf16 %v116, %v113
    %v121 = vunpack.c.l.b16 %v119
    %v122 = vunpack.c.h.b16 %v119
    %v123 = vpack.c.b16 %v121, %v121
    %v124 = vpack.c.b16 %v122, %v122
    %vm127 = vcmask 257024
    %128 = vst.msk [vmem:[#allocation7] sm:$0xf] %vm127, %v123
    %129 = vst.msk [vmem:[#allocation7 + $0x4] sm:$0xf] %vm127, %v124
    %130 = vrot.lane.b32.xlu0 %v123, 96
    %v131 = vpop.permute.xlu0 %130
    %132 = vrot.lane.b32.xlu0 %v124, 96
    %v133 = vpop.permute.xlu0 %132
    %136 = vst.msk [vmem:[#allocation8] sm:$0xf] %vm127, %v131
    %137 = vst.msk [vmem:[#allocation8 + $0x4] sm:$0xf] %vm127, %v133
    %138 = vrot.lane.b32.xlu0 %v123, 64
    %v139 = vpop.permute.xlu0 %138
    %140 = vrot.lane.b32.xlu0 %v124, 64
    %v141 = vpop.permute.xlu0 %140
    %144 = vst.msk [vmem:[#allocation10] sm:$0xf] %vm127, %v139
    %145 = vst.msk [vmem:[#allocation10 + $0x4] sm:$0xf] %vm127, %v141
    // Predicated region
    $region22: #{tpu_custom_call.1} parent=1 // pred_check
      _
    $region23: #{tpu_custom_call.1} parent=1 // pred_check_branch
      %147 = sbr.rel (0) target = $region25
    $region24: #{tpu_custom_call.1} parent=1 // pred_region
      %s149 = ssub.s32 128, 128
      %150 = vsyncadd [#allocation4], %s149
      %s151 = sshll.u32 [#allocation7], 4
      %s152 = int_to_ptr.vmem [resolvable:$true] %s151
      %157 = dma.vmem_to_hbm [thread:$0]  %s152, 128, %s3, [#allocation4], 64, 64, 4
    $region25: #{tpu_custom_call.1} parent=1 // pred_fallthru
      _
    // Predicated region
    $region26: #{tpu_custom_call.1} parent=1 // pred_check
      _
    $region27: #{tpu_custom_call.1} parent=1 // pred_check_branch
      %159 = sbr.rel (0) target = $region29
    $region28: #{tpu_custom_call.1} parent=1 // pred_region
      %s161 = ssub.s32 128, 128
      %162 = vsyncadd [#allocation9], %s161
      %s163 = sshll.u32 [#allocation8], 4
      %s164 = int_to_ptr.vmem [resolvable:$true] %s163
      %169 = dma.vmem_to_hbm [thread:$0]  %s164, 128, %s4, [#allocation9], 64, 64, 4
    $region29: #{tpu_custom_call.1} parent=1 // pred_fallthru
      _
    // Predicated region
    $region30: #{tpu_custom_call.1} parent=1 // pred_check
      _
    $region31: #{tpu_custom_call.1} parent=1 // pred_check_branch
      %171 = sbr.rel (0) target = $region33
    $region32: #{tpu_custom_call.1} parent=1 // pred_region
      %s173 = ssub.s32 128, 128
      %174 = vsyncadd [#allocation9], %s173
      %s175 = sshll.u32 [#allocation10], 4
      %s176 = int_to_ptr.vmem [resolvable:$true] %s175
      %181 = dma.vmem_to_hbm [thread:$0]  %s176, 128, %s5, [#allocation9], 64, 64, 4
    $region33: #{tpu_custom_call.1} parent=1 // pred_fallthru
      _
    // Predicated region
    $region34: #{tpu_custom_call.1} parent=1 // pred_check
      _
    $region35: #{tpu_custom_call.1} parent=1 // pred_check_branch
      %183 = sbr.rel (0) target = $region37
    $region36: #{tpu_custom_call.1} parent=1 // pred_region
      %184 = dma.done [#allocation4], 128
    $region37: #{tpu_custom_call.1} parent=1 // pred_fallthru
      _
    // Predicated region
    $region38: #{tpu_custom_call.1} parent=1 // pred_check
      _
    $region39: #{tpu_custom_call.1} parent=1 // pred_check_branch
      %186 = sbr.rel (0) target = $region41
    $region40: #{tpu_custom_call.1} parent=1 // pred_region
      %187 = dma.done [#allocation9], 128
    $region41: #{tpu_custom_call.1} parent=1 // pred_fallthru
      _
    // Predicated region
    $region42: #{tpu_custom_call.1} parent=1 // pred_check
      _
    $region43: #{tpu_custom_call.1} parent=1 // pred_check_branch
      %189 = sbr.rel (0) target = $region45
    $region44: #{tpu_custom_call.1} parent=1 // pred_region
      %190 = dma.done [#allocation9], 128
    $region45: #{tpu_custom_call.1} parent=1 // pred_fallthru
      _
    %191 = vsyncpa [#allocation3], 1
    %192 = vsyncpa [#allocation6], 1
    %193 = vsyncpa [#allocation4], 1
    %194 = vsyncpa [#allocation9], 1

// kernel: tpu_custom_call.1
$region0: #{tpu_custom_call.1}
  #allocation0 [shape = 'u32[]', space=smem, size = 0x4, offset = 0x4, fixed_abs, tag = 'smem constant byte address 0x4 - core index']
  #allocation1 [shape = 'u32[144,128]{1,0:T(1,128)}', space=vmem, size = 0x12000, scoped, tag = 'internal scratch']
  %s0 = inlined_call_operand.hbm [shape: f32[16,32], index: 0, kind: input, shape index: {}]
  %s1 = inlined_call_operand.hbm [shape: bf16[32,96], index: 1, kind: input, shape index: {}]
  %s2 = inlined_call_operand.vmem [shape: f32[1,96], index: 2, kind: input, shape index: {}]
  %s3 = inlined_call_operand.hbm [shape: bf16[16,32], index: 3, kind: output, shape index: {0}]
  %s4 = inlined_call_operand.hbm [shape: bf16[16,32], index: 4, kind: output, shape index: {1}]
  %s5 = inlined_call_operand.hbm [shape: bf16[16,32], index: 5, kind: output, shape index: {2}]
  %6 = xla_tuple %s3, %s4, %s5
  %s7 = sld [smem:[#allocation0]]
  $region46: #{tpu_custom_call.1} parent=0
    _
  %s9 = ssub.s32 1, %s7
  %s10 = scalar_select 0, %s9, %s7
  $region1: #{tpu_custom_call.1} parent=0
    #allocation2 [shape = 'u8[8192]{0}', space=vmem, size = 0x2000, scoped, tag = 'input window, operand 0, single buffered']
    #allocation3 [shape = 's32[1]{0}', space=sflag, size = 0x4, scoped, tag = 'scoped memory for tpu_custom_call.1']
    #allocation4 [shape = 's32[1]{0}', space=sflag, size = 0x4, scoped, tag = 'scoped memory for tpu_custom_call.1']
    #allocation5 [shape = 'u8[8192]{0}', space=vmem, size = 0x2000, scoped, tag = 'input window, operand 1, single buffered']
    #allocation6 [shape = 's32[1]{0}', space=sflag, size = 0x4, scoped, tag = 'scoped memory for tpu_custom_call.1']
    #allocation7 [shape = 'u8[4096]{0}', space=vmem, size = 0x1000, scoped, tag = 'output window, operand 0, single buffered']
    #allocation8 [shape = 'u8[4096]{0}', space=vmem, size = 0x1000, scoped, tag = 'output window, operand 1, single buffered']
    #allocation9 [shape = 's32[1]{0}', space=sflag, size = 0x4, scoped, tag = 'scoped memory for tpu_custom_call.1']
    #allocation10 [shape = 'u8[4096]{0}', space=vmem, size = 0x1000, scoped, tag = 'output window, operand 2, single buffered']
    %11 = vsyncpa [#allocation3], 0
    %12 = vsyncpa [#allocation6], 0
    %13 = vsyncpa [#allocation4], 0
    %14 = vsyncpa [#allocation9], 0
    // Predicated region
    $region2: #{tpu_custom_call.1} parent=1 // pred_check
      _
    $region3: #{tpu_custom_call.1} parent=1 // pred_check_branch
      %16 = sbr.rel (0) target = $region5
    $region4: #{tpu_custom_call.1} parent=1 // pred_region
      %s18 = ssub.s32 256, 256
      %19 = vsyncadd [#allocation3], %s18
      %s20 = sshll.u32 [#allocation2], 4
      %s21 = int_to_ptr.vmem [resolvable:$true] %s20
      %26 = dma.hbm_to_vmem [thread:$0]  %s0, 256, %s21, [#allocation3], 128, 128, 8
    $region5: #{tpu_custom_call.1} parent=1 // pred_fallthru
      _
    // Predicated region
    $region6: #{tpu_custom_call.1} parent=1 // pred_check
      _
    $region7: #{tpu_custom_call.1} parent=1 // pred_check_branch
      %28 = sbr.rel (0) target = $region9
    $region8: #{tpu_custom_call.1} parent=1 // pred_region
      %s30 = ssub.s32 256, 256
      %31 = vsyncadd [#allocation6], %s30
      %s32 = sshll.u32 [#allocation5], 4
      %s33 = int_to_ptr.vmem [resolvable:$true] %s32
      %38 = dma.hbm_to_vmem [thread:$0]  %s1, 256, %s33, [#allocation6], 64, 64, 4
    $region9: #{tpu_custom_call.1} parent=1 // pred_fallthru
      _
    // Predicated region
    $region10: #{tpu_custom_call.1} parent=1 // pred_check
      _
    $region11: #{tpu_custom_call.1} parent=1 // pred_check_branch
      %40 = sbr.rel (0) target = $region13
    $region12: #{tpu_custom_call.1} parent=1 // pred_region
      _
    $region13: #{tpu_custom_call.1} parent=1 // pred_fallthru
      _
    // Predicated region
    $region14: #{tpu_custom_call.1} parent=1 // pred_check
      _
    $region15: #{tpu_custom_call.1} parent=1 // pred_check_branch
      %42 = sbr.rel (0) target = $region17
    $region16: #{tpu_custom_call.1} parent=1 // pred_region
      %43 = dma.done [#allocation3], 256
    $region17: #{tpu_custom_call.1} parent=1 // pred_fallthru
      _
    // Predicated region
    $region18: #{tpu_custom_call.1} parent=1 // pred_check
      _
    $region19: #{tpu_custom_call.1} parent=1 // pred_check_branch
      %45 = sbr.rel (0) target = $region21
    $region20: #{tpu_custom_call.1} parent=1 // pred_region
      %46 = dma.done [#allocation6], 256
    $region21: #{tpu_custom_call.1} parent=1 // pred_fallthru
      _
    %v48 = vld [vmem:[#allocation2] sm:$0xff]
    %v49 = vld [vmem:[#allocation2 + $0x8] sm:$0xff]
    %v50 = vpack.c.bf16 %v49, %v48
    %v51 = vld [vmem:[#allocation5] sm:$0xf]
    %v52 = vld [vmem:[#allocation5 + $0x4] sm:$0xf]
    %v53 = vld [vmem:[#allocation5 + $0x8] sm:$0xf]
    %v54 = vld [vmem:[#allocation5 + $0xc] sm:$0xf]
    %v55 = vld [vmem:[%s2] sm:$0x1]
    %v57 = vlaneseq
    %v58 = vshrl.u32 %v57, 7
    %v59 = vsub.s32 0, %v58
    %v60 = vrot.slane %v55, %v59
    %v66 = vunpack.c.l.b16 %v51
    %v67 = vunpack.c.l.b16 %v52
    %v68 = vunpack.c.l.b16 %v53
    %v69 = vunpack.c.l.b16 %v54
    %v70 = vpack.c.b16 %v67, %v66
    %v71 = vpack.c.b16 %v69, %v68
    %vm74 = vcmask 261120
    %v76 = vsel %vm74, %v50, 0
    %78 = vmatprep.subr.bf16.mxu0 0
    %79 = vmatpush1.bf16.msra.mxu0 %v70
    %80 = vmatprep.subr.bf16.mxu0 0
    %81 = vmatpush1.bf16.msra.mxu0 %v71
    %82 = vmatprep.subr.bf16.mxu0 0
    %83 = vmatpush1.bf16.msra.mxu0 0
    %84 = vmatprep.subr.bf16.mxu0 0
    %85 = vmatpush1.bf16.msra.mxu0 0
    %86 = vmatprep.subr.bf16.mxu0 0
    %87 = vmatpush1.bf16.msra.mxu0 0
    %88 = vmatprep.subr.bf16.mxu0 0
    %89 = vmatpush1.bf16.msra.mxu0 0
    %90 = vmatprep.subr.bf16.mxu0 0
    %91 = vmatpush1.bf16.msra.mxu0 0
    %92 = vmatprep.subr.bf16.mxu0 0
    %93 = vmatpush1.bf16.msra.mxu0 0
    %94 = vmatprep.subr.bf16.mxu0 0
    %95 = vmatpush1.bf16.msra.mxu0 0
    %96 = vmatprep.subr.bf16.mxu0 0
    %97 = vmatpush1.bf16.msra.mxu0 0
    %98 = vmatprep.subr.bf16.mxu0 0
    %99 = vmatpush1.bf16.msra.mxu0 0
    %100 = vmatprep.subr.bf16.mxu0 0
    %101 = vmatpush1.bf16.msra.mxu0 0
    %102 = vmatprep.subr.bf16.mxu0 0
    %103 = vmatpush1.bf16.msra.mxu0 0
    %104 = vmatprep.subr.bf16.mxu0 0
    %105 = vmatpush1.bf16.msra.mxu0 0
    %106 = vmatprep.subr.bf16.mxu0 0
    %107 = vmatpush1.bf16.msra.mxu0 0
    %108 = vmatprep.subr.bf16.mxu0 0
    %109 = vmatpush1.bf16.msra.mxu0 0
    %110 = vmatprep.mubr.bf16.mxu0 0
    %111 = vmatmul.mubr.bf16.gmra.mrb[0].mxu0 %v76
    %v112 = vpop.f32.mrb[0].mxu0
    %v113 = vadd.f32 %v60, %v112
    %v114 = vpop.f32.mrb[0].mxu0
    %v115 = vpop.f32.mrb[0].mxu0
    %v116 = vadd.f32 %v60, %v115
    %v117 = vpop.f32.mrb[0].mxu0
    %118 = vdwg.mxu0
    %v119 = vpack.c.bf16 %v116, %v113
    %v121 = vunpack.c.l.b16 %v119
    %v122 = vunpack.c.h.b16 %v119
    %v123 = vpack.c.b16 %v121, %v121
    %v124 = vpack.c.b16 %v122, %v122
    %vm127 = vcmask 257024
    %128 = vst.msk [vmem:[#allocation7] sm:$0xf] %vm127, %v123
    %129 = vst.msk [vmem:[#allocation7 + $0x4] sm:$0xf] %vm127, %v124
    %130 = vrot.lane.b32.xlu0 %v123, 96
    %v131 = vpop.permute.xlu0 %130
    %132 = vrot.lane.b32.xlu0 %v124, 96
    %v133 = vpop.permute.xlu0 %132
    %136 = vst.msk [vmem:[#allocation8] sm:$0xf] %vm127, %v131
    %137 = vst.msk [vmem:[#allocation8 + $0x4] sm:$0xf] %vm127, %v133
    %138 = vrot.lane.b32.xlu0 %v123, 64
    %v139 = vpop.permute.xlu0 %138
    %140 = vrot.lane.b32.xlu0 %v124, 64
    %v141 = vpop.permute.xlu0 %140
    %144 = vst.msk [vmem:[#allocation10] sm:$0xf] %vm127, %v139
    %145 = vst.msk [vmem:[#allocation10 + $0x4] sm:$0xf] %vm127, %v141
    // Predicated region
    $region22: #{tpu_custom_call.1} parent=1 // pred_check
      _
    $region23: #{tpu_custom_call.1} parent=1 // pred_check_branch
      %147 = sbr.rel (0) target = $region25
    $region24: #{tpu_custom_call.1} parent=1 // pred_region
      %s149 = ssub.s32 128, 128
      %150 = vsyncadd [#allocation4], %s149
      %s151 = sshll.u32 [#allocation7], 4
      %s152 = int_to_ptr.vmem [resolvable:$true] %s151
      %157 = dma.vmem_to_hbm [thread:$0]  %s152, 128, %s3, [#allocation4], 64, 64, 4
    $region25: #{tpu_custom_call.1} parent=1 // pred_fallthru
      _
    // Predicated region
    $region26: #{tpu_custom_call.1} parent=1 // pred_check
      _
    $region27: #{tpu_custom_call.1} parent=1 // pred_check_branch
      %159 = sbr.rel (0) target = $region29
    $region28: #{tpu_custom_call.1} parent=1 // pred_region
      %s161 = ssub.s32 128, 128
      %162 = vsyncadd [#allocation9], %s161
      %s163 = sshll.u32 [#allocation8], 4
      %s164 = int_to_ptr.vmem [resolvable:$true] %s163
      %169 = dma.vmem_to_hbm [thread:$0]  %s164, 128, %s4, [#allocation9], 64, 64, 4
    $region29: #{tpu_custom_call.1} parent=1 // pred_fallthru
      _
    // Predicated region
    $region30: #{tpu_custom_call.1} parent=1 // pred_check
      _
    $region31: #{tpu_custom_call.1} parent=1 // pred_check_branch
      %171 = sbr.rel (0) target = $region33
    $region32: #{tpu_custom_call.1} parent=1 // pred_region
      %s173 = ssub.s32 128, 128
      %174 = vsyncadd [#allocation9], %s173
      %s175 = sshll.u32 [#allocation10], 4
      %s176 = int_to_ptr.vmem [resolvable:$true] %s175
      %181 = dma.vmem_to_hbm [thread:$0]  %s176, 128, %s5, [#allocation9], 64, 64, 4
    $region33: #{tpu_custom_call.1} parent=1 // pred_fallthru
      _
    // Predicated region
    $region34: #{tpu_custom_call.1} parent=1 // pred_check
      _
    $region35: #{tpu_custom_call.1} parent=1 // pred_check_branch
      %183 = sbr.rel (0) target = $region37
    $region36: #{tpu_custom_call.1} parent=1 // pred_region
      %184 = dma.done [#allocation4], 128
    $region37: #{tpu_custom_call.1} parent=1 // pred_fallthru
      _
    // Predicated region
    $region38: #{tpu_custom_call.1} parent=1 // pred_check
      _
    $region39: #{tpu_custom_call.1} parent=1 // pred_check_branch
      %186 = sbr.rel (0) target = $region41
    $region40: #{tpu_custom_call.1} parent=1 // pred_region
      %187 = dma.done [#allocation9], 128
    $region41: #{tpu_custom_call.1} parent=1 // pred_fallthru
      _
    // Predicated region
    $region42: #{tpu_custom_call.1} parent=1 // pred_check
      _
    $region43: #{tpu_custom_call.1} parent=1 // pred_check_branch
      %189 = sbr.rel (0) target = $region45
    $region44: #{tpu_custom_call.1} parent=1 // pred_region
      %190 = dma.done [#allocation9], 128
    $region45: #{tpu_custom_call.1} parent=1 // pred_fallthru
      _
    %191 = vsyncpa [#allocation3], 1
    %192 = vsyncpa [#allocation6], 1
    %193 = vsyncpa [#allocation4], 1
    %194 = vsyncpa [#allocation9], 1

</llo_original>
